<compile_context>
chip_gen: v7x
topology: tpu7x:2x2x1
jax: 0.10.0
libtpu: 0.0.40
codegen_flags: <defaults>
</compile_context>

<pallas_src>
import math

import jax
import jax.numpy as jnp
from jax.experimental import pallas as pl
from jax.experimental.pallas import tpu as pltpu

_SQRT_2_OVER_PI = math.sqrt(2.0 / math.pi)
_GELU_COEFF = 0.044715


def _gelu_tanh_kernel(x_ref, o_ref):
    x = x_ref[...].astype(jnp.float32)
    inner = _SQRT_2_OVER_PI * (x + _GELU_COEFF * x * x * x)
    o_ref[...] = (0.5 * x * (1.0 + jnp.tanh(inner))).astype(o_ref.dtype)


def _round_up(a, b):
    return ((a + b - 1) // b) * b


def _sublane_multiple(dtype):
    # packed-sublane rows per vreg tile: 8 for 4-byte, 16 for bf16/fp16, 32 for int8/fp8
    return max(8, 32 // jnp.dtype(dtype).itemsize)


def _pick_block_rows(rows, cols, dtype):
    sub = _sublane_multiple(dtype)
    itemsize = jnp.dtype(dtype).itemsize
    # ~2 MiB per tile -> ~8 MiB with in+out double-buffering; fits v5e's 16 MiB
    # scoped-VMEM default and leaves headroom on v7x (64 MiB physical, 2 TCs).
    target_rows = max(sub, (2 * 1024 * 1024) // (cols * itemsize))
    # Aim for >= ~8 grid steps when the input is big enough, so the "parallel"
    # axis shards across both v7x TensorCores and the pipeline has work.
    steps_rows = _round_up(pl.cdiv(rows, 8), sub)
    block_rows = max(sub, min(target_rows, steps_rows))
    if block_rows >= rows:
        return rows  # single block; "block dim equals full array dim" is allowed
    return block_rows


def _run(x2d, block_rows, cols, dtype):
    rows = x2d.shape[0]
    return pl.pallas_call(
        _gelu_tanh_kernel,
        out_shape=jax.ShapeDtypeStruct((rows, cols), dtype),
        grid=(pl.cdiv(rows, block_rows),),
        in_specs=[pl.BlockSpec((block_rows, cols), lambda i: (i, 0))],
        out_specs=pl.BlockSpec((block_rows, cols), lambda i: (i, 0)),
        compiler_params=pltpu.CompilerParams(dimension_semantics=("parallel",)),
    )(x2d)


@jax.jit
def pallas_gelu_tanh(x):
    """GELU with tanh approximation (== F.gelu(x, approximate='tanh'))."""
    orig_shape = x.shape
    dtype = x.dtype
    n = x.size
    if n == 0:
        return x

    flat = x.reshape(-1)

    # Fast path: total size divides a lane-dense width -> free reshape, no pad,
    # no trailing output slice.  Covers all typical DiT activation shapes.
    for cols in (1024, 512, 256, 128):
        if n % cols == 0:
            rows = n // cols
            block_rows = _pick_block_rows(rows, cols, dtype)
            out = _run(flat.reshape(rows, cols), block_rows, cols, dtype)
            return out.reshape(orig_shape)

    # Ragged path (rare): pad only to the next multiple of 128 lanes (< 128
    # padded elements; gelu(0) == 0 and the tail is sliced off afterwards).
    cols = 128
    padded = _round_up(n, cols)
    flat = jnp.pad(flat, (0, padded - n))
    rows = padded // cols
    block_rows = _pick_block_rows(rows, cols, dtype)
    out = _run(flat.reshape(rows, cols), block_rows, cols, dtype)
    return out.reshape(-1)[:n].reshape(orig_shape)


def _reference(x):
    xf = x.astype(jnp.float32)
    inner = _SQRT_2_OVER_PI * (xf + _GELU_COEFF * xf ** 3)
    return (0.5 * xf * (1.0 + jnp.tanh(inner))).astype(x.dtype)


if __name__ == "__main__":
    key = jax.random.PRNGKey(0)
    k1, k2, k3 = jax.random.split(key, 3)

    # Primary shape from the DiT module (f32, fast path, no padding).
    x = jax.random.normal(k1, (2, 4, 16, 16), dtype=jnp.float32)
    out = jax.block_until_ready(pallas_gelu_tanh(x))
    assert out.shape == x.shape, out.shape
    assert out.dtype == x.dtype, out.dtype
    assert jnp.allclose(out, _reference(x), atol=1e-5, rtol=1e-5)

    # bf16 fast path (exercises 16-row sublane alignment / half-width dtype).
    xb = jax.random.normal(k2, (2, 8, 32), dtype=jnp.bfloat16)
    ob = jax.block_until_ready(pallas_gelu_tanh(xb))
    assert ob.shape == xb.shape and ob.dtype == xb.dtype
    assert jnp.allclose(ob.astype(jnp.float32),
                        _reference(xb).astype(jnp.float32),
                        atol=1e-2, rtol=1e-2)

    # Ragged path (element count not a multiple of 128).
    xr = jax.random.normal(k3, (3, 5, 7), dtype=jnp.float32)
    orr = jax.block_until_ready(pallas_gelu_tanh(xr))
    assert orr.shape == xr.shape and orr.dtype == xr.dtype
    assert jnp.allclose(orr, _reference(xr), atol=1e-5, rtol=1e-5)

    print("KERNEL_OK")
</pallas_src>

<mosaic_0001>
module attributes {stable_mosaic.version = 11 : i64} {
  func.func @_gelu_tanh_kernel(%arg0: i32, %arg1: memref<2x1024xf32, #tpu.memory_space<vmem>>, %arg2: memref<2x1024xf32, #tpu.memory_space<vmem>>) attributes {dimension_semantics = [#tpu.dimension_semantics<parallel>], iteration_bounds = array<i64: 1>, scalar_prefetch = 0 : i64, scratch_operands = 0 : i64, tpu.core_type = #tpu.core_type<tc>, window_params = [{transform_indices = @transform_0, window_bounds = array<i64: 2, 1024>}, {transform_indices = @transform_1, window_bounds = array<i64: 2, 1024>}]} {
    %c0 = arith.constant 0 : index
    %c0_0 = arith.constant 0 : index
    %0 = vector.load %arg1[%c0, %c0_0] : memref<2x1024xf32, #tpu.memory_space<vmem>>, vector<2x1024xf32>
    %cst = arith.constant 4.471500e-02 : f32
    %1 = vector.broadcast %cst : f32 to vector<2x1024xf32>
    %2 = arith.mulf %1, %0 : vector<2x1024xf32>
    %3 = arith.mulf %2, %0 : vector<2x1024xf32>
    %4 = arith.mulf %3, %0 : vector<2x1024xf32>
    %5 = arith.addf %0, %4 : vector<2x1024xf32>
    %cst_1 = arith.constant 0.797884583 : f32
    %6 = vector.broadcast %cst_1 : f32 to vector<2x1024xf32>
    %7 = arith.mulf %6, %5 : vector<2x1024xf32>
    %cst_2 = arith.constant 5.000000e-01 : f32
    %8 = vector.broadcast %cst_2 : f32 to vector<2x1024xf32>
    %9 = arith.mulf %8, %0 : vector<2x1024xf32>
    %10 = math.tanh %7 : vector<2x1024xf32>
    %cst_3 = arith.constant 1.000000e+00 : f32
    %11 = vector.broadcast %cst_3 : f32 to vector<2x1024xf32>
    %12 = arith.addf %11, %10 : vector<2x1024xf32>
    %13 = arith.mulf %9, %12 : vector<2x1024xf32>
    %c0_4 = arith.constant 0 : index
    %c0_5 = arith.constant 0 : index
    %14 = vector.load %arg2[%c0_4, %c0_5] : memref<2x1024xf32, #tpu.memory_space<vmem>>, vector<2x1024xf32>
    tpu.vector_store %arg2[%c0_4, %c0_5], %13 {strides = array<i32>} : memref<2x1024xf32, #tpu.memory_space<vmem>>, vector<2x1024xf32>,
    return
  }
  func.func @transform_0(%arg0: i32) -> (i32, i32) {
    %c0_i32 = arith.constant 0 : i32
    %c0_i32_0 = arith.constant 0 : i32
    return %arg0, %c0_i32 : i32, i32
  }
  func.func @transform_1(%arg0: i32) -> (i32, i32) {
    %c0_i32 = arith.constant 0 : i32
    %c0_i32_0 = arith.constant 0 : i32
    return %arg0, %c0_i32 : i32, i32
  }
}

</mosaic_0001>

<llo_original>
// kernel: pallas_gelu_tanh.1
$region0: #{pallas_gelu_tanh.1}
  #allocation0 [shape = 'u32[]', space=smem, size = 0x4, offset = 0x4, fixed_abs, tag = 'smem constant byte address 0x4 - core index']
  #allocation1 [shape = 'u32[144,128]{1,0:T(1,128)}', space=vmem, size = 0x12000, scoped, tag = 'internal scratch']
  %s0 = inlined_call_operand.vmem [shape: f32[2,1024], index: 0, kind: input, shape index: {}]
  %s1 = inlined_call_operand.vmem [shape: f32[2,1024], index: 1, kind: output, shape index: {}]
  %s2 = sld [smem:[#allocation0]]
  $region14: #{pallas_gelu_tanh.1} parent=0
    _
  %s4 = ssub.s32 1, %s2
  %s5 = scalar_select 0, %s4, %s2
  // Predicated region
  $region2: #{pallas_gelu_tanh.1} parent=0 // pred_check
    _
  $region3: #{pallas_gelu_tanh.1} parent=0 // pred_check_branch
    %7 = sbr.rel (0) target = $region5
  $region4: #{pallas_gelu_tanh.1} parent=0 // pred_region
    _
  $region5: #{pallas_gelu_tanh.1} parent=0 // pred_fallthru
    _
  %v8 = vld [vmem:[%s0] sm:$0xff]
  %v9 = vld [vmem:[%s0 + $0x8] sm:$0xff]
  %v10 = vmul.f32 %v8, 0.044715
  %v11 = vmul.f32 %v9, 0.044715
  %v12 = vmul.f32 %v10, %v8
  %v13 = vmul.f32 %v11, %v9
  %v14 = vmul.f32 %v12, %v8
  %v15 = vmul.f32 %v13, %v9
  %v16 = vadd.f32 %v8, %v14
  %v17 = vadd.f32 %v9, %v15
  %v18 = vmul.f32 %v16, 0.7978846
  %v19 = vmul.f32 %v17, 0.7978846
  %v20 = vmul.f32 %v8, 0.5
  %v21 = vmul.f32 %v9, 0.5
  %v22 = vtanh.pop %v18
  %v23 = vtanh.pop %v19
  %v24 = vadd.f32 %v22, 1.0
  %v25 = vadd.f32 %v23, 1.0
  %v26 = vmul.f32 %v20, %v24
  %v27 = vmul.f32 %v21, %v25
  %28 = vst [vmem:[%s1] sm:$0xff] %v26
  %29 = vst [vmem:[%s1 + $0x8] sm:$0xff] %v27
  // Predicated region
  $region6: #{pallas_gelu_tanh.1} parent=0 // pred_check
    _
  $region7: #{pallas_gelu_tanh.1} parent=0 // pred_check_branch
    %31 = sbr.rel (0) target = $region9
  $region8: #{pallas_gelu_tanh.1} parent=0 // pred_region
    _
  $region9: #{pallas_gelu_tanh.1} parent=0 // pred_fallthru
    _
  // Predicated region
  $region10: #{pallas_gelu_tanh.1} parent=0 // pred_check
    _
  $region11: #{pallas_gelu_tanh.1} parent=0 // pred_check_branch
    %33 = sbr.rel (0) target = $region13
  $region12: #{pallas_gelu_tanh.1} parent=0 // pred_region
    _
  $region13: #{pallas_gelu_tanh.1} parent=0 // pred_fallthru
    _

</llo_original>
